<compile_context>
chip_gen: v7x
topology: tpu7x:2x2x1
jax: 0.10.0
libtpu: 0.0.40
codegen_flags: <defaults>
</compile_context>

<pallas_src>
import functools

import jax
import jax.numpy as jnp
from jax.experimental import pallas as pl
from jax.experimental.pallas import tpu as pltpu


def _round_up(x, m):
    return ((x + m - 1) // m) * m


def _gather_packed_kernel(idx_ref, tbl_ref, o_ref):
    """One-hot gather of the fused (tanh(emb@W^T+b)) table on the MXU.

    idx_ref: (TR, PACK) int32, pre-offset by slot*num_emb -> values in [0, PACK*E)
    tbl_ref: (PACK*E, PACK*F) f32 block-diagonal packed table (VMEM resident)
    o_ref:   (TR, PACK*F)      row r packs PACK consecutive output rows, lane dense
    """
    tr, pack = idx_ref.shape
    ke = tbl_ref.shape[0]

    idx = idx_ref[...]                                              # (TR, PACK)
    lane = jax.lax.broadcasted_iota(jnp.int32, (tr, ke), 1)         # (TR, PACK*E)

    # Slot ranges are disjoint (offset by j*num_emb), so summing the per-slot
    # one-hots yields an exact 0/1 matrix.
    onehot = jnp.zeros((tr, ke), dtype=tbl_ref.dtype)
    for j in range(pack):                                           # PACK <= 4, unrolled
        onehot = onehot + (idx[:, j:j + 1] == lane).astype(tbl_ref.dtype)

    # Gather via MXU: exact (entries are 0/1), full 256-deep K on v6e/v7x.
    o_ref[...] = jnp.dot(onehot, tbl_ref[...],
                         preferred_element_type=jnp.float32).astype(o_ref.dtype)


def gather_fused_table(indices_flat, table_packed, *, num_emb, out_features,
                       pack, max_tile=2048):
    """table_packed-gather of a flat index vector. Returns (N, out_features)."""
    n = indices_flat.shape[0]
    ke, f_blk = table_packed.shape

    align = 8 * pack                        # packed rows must be sublane-aligned
    if n > 1024:
        # Guarantee a >=2-step "parallel" grid so both v7x TensorCores get work.
        tm = min(max_tile, _round_up(pl.cdiv(n, 2), align))
    else:
        tm = _round_up(max(n, 1), align)
    tm = max(tm, align)
    n_pad = _round_up(n, tm)

    rows_pad = n_pad // pack                # packed output rows
    tr = tm // pack                         # packed rows per grid step

    idx = jnp.pad(indices_flat.astype(jnp.int32), (0, n_pad - n))
    # Per-slot offsets make each packed column address its own table block.
    idx_off = idx.reshape(rows_pad, pack) + jnp.arange(pack, dtype=jnp.int32) * num_emb

    cost = pl.CostEstimate(
        flops=2 * rows_pad * ke * f_blk,
        transcendentals=0,
        bytes_accessed=4 * (idx_off.size + table_packed.size + rows_pad * f_blk),
    )

    out = pl.pallas_call(
        _gather_packed_kernel,
        out_shape=jax.ShapeDtypeStruct((rows_pad, f_blk), table_packed.dtype),
        grid_spec=pltpu.PrefetchScalarGridSpec(
            num_scalar_prefetch=0,
            grid=(rows_pad // tr,),
            in_specs=[
                pl.BlockSpec((tr, pack), lambda i: (i, 0)),      # per-tile indices
                pl.BlockSpec((ke, f_blk), lambda i: (0, 0)),     # resident packed table
            ],
            out_specs=pl.BlockSpec((tr, f_blk), lambda i: (i, 0)),
        ),
        compiler_params=pltpu.CompilerParams(dimension_semantics=("parallel",)),
        cost_estimate=cost,
    )(idx_off, table_packed)

    if pack > 1:
        # Contiguous row-major unpack: (rows_pad, pack*F) -> (n_pad, F). No copy.
        out = out.reshape(n_pad, f_blk // pack)
    return out[:n, :out_features]


def _dense_expander_forward(table_packed, trip1, trip2, *, num_emb, out_features,
                            pack, max_tile):
    # Both branches through ONE pallas_call: concat -> fused gather -> split.
    n1 = trip1.size
    idx = jnp.concatenate([trip1.reshape(-1), trip2.reshape(-1)], axis=0)
    out = gather_fused_table(idx, table_packed, num_emb=num_emb,
                             out_features=out_features, pack=pack,
                             max_tile=max_tile)
    m1 = out[:n1].reshape(*trip1.shape, out_features)
    m2 = out[n1:].reshape(*trip2.shape, out_features)
    return m1, m2


class DenseExpanderPallas:
    """JAX/Pallas port of the PyTorch DenseExpander forward pass."""

    def __init__(self, emb_weights, lin_weight, lin_bias=None, *, max_tile=2048):
        # emb_weights: (num_embeddings, emb_dim)
        # lin_weight : (out_features, in_features)   (PyTorch nn.Linear layout)
        # lin_bias   : (out_features,) or None
        num_emb, emb_dim = emb_weights.shape
        out_features = lin_weight.shape[0]
        if lin_bias is None:
            lin_bias = jnp.zeros((out_features,), emb_weights.dtype)

        # Fold Embedding -> Linear -> Tanh into one table (exact: the gather
        # commutes with the row-wise affine map + tanh).
        table = jnp.tanh(emb_weights @ lin_weight.T + lin_bias)     # (E, F)

        if out_features <= 128 and 128 % out_features == 0:
            pack = 128 // out_features
        else:
            pack = 1

        if pack > 1:
            # Block-diagonal packed table: slot j maps table rows to output
            # columns [j*F, (j+1)*F) so one matmul emits PACK packed rows.
            eye = jnp.eye(pack, dtype=table.dtype)
            table_packed = jnp.einsum("pq,ef->peqf", eye, table).reshape(
                pack * num_emb, pack * out_features)
        else:
            f_blk = _round_up(out_features, 128)
            table_packed = jnp.pad(table, ((0, 0), (0, f_blk - out_features)))

        self.num_emb = num_emb
        self.emb_dim = emb_dim
        self.out_features = out_features
        self.pack = pack
        self.table_packed = table_packed

        self._forward = jax.jit(functools.partial(
            _dense_expander_forward,
            num_emb=num_emb, out_features=out_features, pack=pack,
            max_tile=max_tile))

    def __call__(self, trip1, trip2):
        return self._forward(self.table_packed, trip1, trip2)


if __name__ == "__main__":
    num_embeddings = 64
    emb_dim = 32            # in_features
    out_features = 32
    batch, seq = 2, 8

    key = jax.random.PRNGKey(0)
    k_emb, k_w, k_b, k_i1, k_i2 = jax.random.split(key, 5)

    # Deterministic synthetic parameters (shapes per module __init__).
    emb_weights = jax.random.normal(k_emb, (num_embeddings, emb_dim), jnp.float32)
    lin_weight = (jax.random.normal(k_w, (out_features, emb_dim), jnp.float32)
                  * (1.0 / jnp.sqrt(emb_dim)))
    lin_bias = jax.random.normal(k_b, (out_features,), jnp.float32) * 0.01

    trip1 = jax.random.randint(k_i1, (batch, seq), 0, num_embeddings, dtype=jnp.int32)
    trip2 = jax.random.randint(k_i2, (batch, seq), 0, num_embeddings, dtype=jnp.int32)

    model = DenseExpanderPallas(emb_weights, lin_weight, lin_bias)
    m1, m2 = model(trip1, trip2)
    jax.block_until_ready((m1, m2))

    # Pure-JAX reference check (same order of ops as the PyTorch module).
    def ref_branch(idx):
        a = emb_weights[idx]
        return jnp.tanh(a @ lin_weight.T + lin_bias)

    r1, r2 = ref_branch(trip1), ref_branch(trip2)
    assert m1.shape == (batch, seq, out_features)
    assert m2.shape == (batch, seq, out_features)
    assert jnp.allclose(m1, r1, atol=1e-5, rtol=1e-5)
    assert jnp.allclose(m2, r2, atol=1e-5, rtol=1e-5)

    print("KERNEL_OK")
</pallas_src>

<mosaic_0001>
module attributes {stable_mosaic.version = 11 : i64} {
  func.func @_gather_packed_kernel(%arg0: i32, %arg1: memref<8x4xi32, #tpu.memory_space<vmem>>, %arg2: memref<256x128xf32, #tpu.memory_space<vmem>>, %arg3: memref<8x128xf32, #tpu.memory_space<vmem>>) attributes {dimension_semantics = [#tpu.dimension_semantics<parallel>], iteration_bounds = array<i64: 1>, scalar_prefetch = 0 : i64, scratch_operands = 0 : i64, tpu.core_type = #tpu.core_type<tc>, window_params = [{transform_indices = @transform_0, window_bounds = array<i64: 8, 4>}, {pipeline_mode = #tpu.pipeline_mode<synchronous>, transform_indices = @transform_1, window_bounds = array<i64: 256, 128>}, {transform_indices = @transform_2, window_bounds = array<i64: 8, 128>}]} {
    %c0 = arith.constant 0 : index
    %c0_0 = arith.constant 0 : index
    %0 = vector.load %arg1[%c0, %c0_0] : memref<8x4xi32, #tpu.memory_space<vmem>>, vector<8x4xi32>
    %1 = tpu.iota {dimensions = array<i32: 1>} : vector<8x256xi32>
    %cst = arith.constant 0.000000e+00 : f32
    %2 = vector.broadcast %cst : f32 to vector<8x256xf32>
    %3 = vector.extract_strided_slice %0 {offsets = [0, 0], sizes = [8, 1], strides = [1, 1]} : vector<8x4xi32> to vector<8x1xi32>
    %4 = vector.broadcast %3 : vector<8x1xi32> to vector<8x256xi32>
    %5 = arith.cmpi eq, %4, %1 : vector<8x256xi32>
    %6 = arith.extui %5 : vector<8x256xi1> to vector<8x256xi32>
    %7 = arith.sitofp %6 : vector<8x256xi32> to vector<8x256xf32>
    %8 = arith.addf %2, %7 : vector<8x256xf32>
    %9 = vector.extract_strided_slice %0 {offsets = [0, 1], sizes = [8, 1], strides = [1, 1]} : vector<8x4xi32> to vector<8x1xi32>
    %10 = vector.broadcast %9 : vector<8x1xi32> to vector<8x256xi32>
    %11 = arith.cmpi eq, %10, %1 : vector<8x256xi32>
    %12 = arith.extui %11 : vector<8x256xi1> to vector<8x256xi32>
    %13 = arith.sitofp %12 : vector<8x256xi32> to vector<8x256xf32>
    %14 = arith.addf %8, %13 : vector<8x256xf32>
    %15 = vector.extract_strided_slice %0 {offsets = [0, 2], sizes = [8, 1], strides = [1, 1]} : vector<8x4xi32> to vector<8x1xi32>
    %16 = vector.broadcast %15 : vector<8x1xi32> to vector<8x256xi32>
    %17 = arith.cmpi eq, %16, %1 : vector<8x256xi32>
    %18 = arith.extui %17 : vector<8x256xi1> to vector<8x256xi32>
    %19 = arith.sitofp %18 : vector<8x256xi32> to vector<8x256xf32>
    %20 = arith.addf %14, %19 : vector<8x256xf32>
    %21 = vector.extract_strided_slice %0 {offsets = [0, 3], sizes = [8, 1], strides = [1, 1]} : vector<8x4xi32> to vector<8x1xi32>
    %22 = vector.broadcast %21 : vector<8x1xi32> to vector<8x256xi32>
    %23 = arith.cmpi eq, %22, %1 : vector<8x256xi32>
    %24 = arith.extui %23 : vector<8x256xi1> to vector<8x256xi32>
    %25 = arith.sitofp %24 : vector<8x256xi32> to vector<8x256xf32>
    %26 = arith.addf %20, %25 : vector<8x256xf32>
    %c0_1 = arith.constant 0 : index
    %c0_2 = arith.constant 0 : index
    %27 = vector.load %arg2[%c0_1, %c0_2] : memref<256x128xf32, #tpu.memory_space<vmem>>, vector<256x128xf32>
    %cst_3 = arith.constant dense<0.000000e+00> : vector<8x128xf32>
    %28 = tpu.matmul %26, %27, %cst_3 {dimension_numbers = #tpu.dot_dimension_numbers<[1], [0], [0], [1], [0, 0, 1, 1], [], []>} : vector<8x256xf32>, vector<256x128xf32>, vector<8x128xf32> -> vector<8x128xf32>
    %c0_4 = arith.constant 0 : index
    %c0_5 = arith.constant 0 : index
    %29 = vector.load %arg3[%c0_4, %c0_5] : memref<8x128xf32, #tpu.memory_space<vmem>>, vector<8x128xf32>
    tpu.vector_store %arg3[%c0_4, %c0_5], %28 {strides = array<i32>} : memref<8x128xf32, #tpu.memory_space<vmem>>, vector<8x128xf32>,
    return
  }
  func.func @transform_0(%arg0: i32) -> (i32, i32) {
    %c0_i32 = arith.constant 0 : i32
    %c0_i32_0 = arith.constant 0 : i32
    return %arg0, %c0_i32 : i32, i32
  }
  func.func @transform_1(%arg0: i32) -> (i32, i32) {
    %c0_i32 = arith.constant 0 : i32
    %c0_i32_0 = arith.constant 0 : i32
    %c0_i32_1 = arith.constant 0 : i32
    return %c0_i32, %c0_i32_0 : i32, i32
  }
  func.func @transform_2(%arg0: i32) -> (i32, i32) {
    %c0_i32 = arith.constant 0 : i32
    %c0_i32_0 = arith.constant 0 : i32
    return %arg0, %c0_i32 : i32, i32
  }
}

</mosaic_0001>

<llo_original>
// kernel: _dense_expander_forward.1
$region0: #{_dense_expander_forward.1}
  #allocation0 [shape = 'u32[]', space=smem, size = 0x4, offset = 0x4, fixed_abs, tag = 'smem constant byte address 0x4 - core index']
  #allocation1 [shape = 'u32[144,128]{1,0:T(1,128)}', space=vmem, size = 0x12000, scoped, tag = 'internal scratch']
  %s0 = inlined_call_operand.vmem [shape: s32[8,4], index: 0, kind: input, shape index: {}]
  %s1 = inlined_call_operand.hbm [shape: f32[256,128], index: 1, kind: input, shape index: {}]
  %s2 = inlined_call_operand.vmem [shape: f32[8,128], index: 2, kind: output, shape index: {}]
  %s3 = sld [smem:[#allocation0]]
  $region22: #{_dense_expander_forward.1} parent=0
    _
  %s5 = ssub.s32 1, %s3
  %s6 = scalar_select 0, %s5, %s3
  $region1: #{_dense_expander_forward.1} parent=0
    #allocation2 [shape = 'u8[131072]{0}', space=vmem, size = 0x20000, scoped, tag = 'input window, operand 1, single buffered']
    #allocation3 [shape = 's32[1]{0}', space=sflag, size = 0x4, scoped, tag = 'scoped memory for _dense_expander_forward.1']
    %7 = vsyncpa [#allocation3], 0
    // Predicated region
    $region2: #{_dense_expander_forward.1} parent=1 // pred_check
      _
    $region3: #{_dense_expander_forward.1} parent=1 // pred_check_branch
      %9 = sbr.rel (0) target = $region5
    $region4: #{_dense_expander_forward.1} parent=1 // pred_region
      _
    $region5: #{_dense_expander_forward.1} parent=1 // pred_fallthru
      _
    // Predicated region
    $region6: #{_dense_expander_forward.1} parent=1 // pred_check
      _
    $region7: #{_dense_expander_forward.1} parent=1 // pred_check_branch
      %11 = sbr.rel (0) target = $region9
    $region8: #{_dense_expander_forward.1} parent=1 // pred_region
      %s13 = ssub.s32 4096, 4096
      %14 = vsyncadd [#allocation3], %s13
      %s15 = sshll.u32 [#allocation2], 4
      %s16 = int_to_ptr.vmem [resolvable:$true] %s15
      %21 = dma.hbm_to_vmem [thread:$0]  %s1, 4096, %s16, [#allocation3], 128, 128, 8
    $region9: #{_dense_expander_forward.1} parent=1 // pred_fallthru
      _
    // Predicated region
    $region10: #{_dense_expander_forward.1} parent=1 // pred_check
      _
    $region11: #{_dense_expander_forward.1} parent=1 // pred_check_branch
      %23 = sbr.rel (0) target = $region13
    $region12: #{_dense_expander_forward.1} parent=1 // pred_region
      %24 = dma.done [#allocation3], 4096
    $region13: #{_dense_expander_forward.1} parent=1 // pred_fallthru
      _
    %v25 = vld [vmem:[%s0] sm:$0xff]
    %v26 = vlaneseq
    %v27 = vand.u32 %v26, 127
    %v28 = vadd.s32 %v27, 128
    %29 = vset.pattern.permute.xlu0 0
    %30 = vperm.xlu0 %29, %v25
    %v31 = vpop.permute.xlu0 %30
    %vm32 = vcmp.eq.s32.totalorder %v31, %v27
    %vm33 = vcmp.eq.s32.totalorder %v31, %v28
    %v34 = vsel %vm32, 1, 0
    %v35 = vsel %vm33, 1, 0
    %v36 = vcvt.s32.f32 %v34
    %v37 = vcvt.s32.f32 %v35
    %v38 = vadd.f32 %v36, 0.0
    %v39 = vadd.f32 %v37, 0.0
    %40 = vset.pattern.permute.xlu0 1
    %41 = vperm.xlu0 %40, %v25
    %v42 = vpop.permute.xlu0 %41
    %vm43 = vcmp.eq.s32.totalorder %v42, %v27
    %vm44 = vcmp.eq.s32.totalorder %v42, %v28
    %v45 = vsel %vm43, 1, 0
    %v46 = vsel %vm44, 1, 0
    %v47 = vcvt.s32.f32 %v45
    %v48 = vcvt.s32.f32 %v46
    %v49 = vadd.f32 %v38, %v47
    %v50 = vadd.f32 %v39, %v48
    %51 = vset.pattern.permute.xlu0 2
    %52 = vperm.xlu0 %51, %v25
    %v53 = vpop.permute.xlu0 %52
    %vm54 = vcmp.eq.s32.totalorder %v53, %v27
    %vm55 = vcmp.eq.s32.totalorder %v53, %v28
    %v56 = vsel %vm54, 1, 0
    %v57 = vsel %vm55, 1, 0
    %v58 = vcvt.s32.f32 %v56
    %v59 = vcvt.s32.f32 %v57
    %v60 = vadd.f32 %v49, %v58
    %v61 = vadd.f32 %v50, %v59
    %62 = vset.pattern.permute.xlu0 3
    %63 = vperm.xlu0 %62, %v25
    %v64 = vpop.permute.xlu0 %63
    %vm65 = vcmp.eq.s32.totalorder %v64, %v27
    %vm66 = vcmp.eq.s32.totalorder %v64, %v28
    %v67 = vsel %vm65, 1, 0
    %v68 = vsel %vm66, 1, 0
    %v69 = vcvt.s32.f32 %v67
    %v70 = vcvt.s32.f32 %v68
    %v71 = vadd.f32 %v60, %v69
    %v72 = vadd.f32 %v61, %v70
    %v73 = vld [vmem:[#allocation2] sm:$0xff]
    %v74 = vld [vmem:[#allocation2 + $0x8] sm:$0xff]
    %v75 = vld [vmem:[#allocation2 + $0x10] sm:$0xff]
    %v76 = vld [vmem:[#allocation2 + $0x18] sm:$0xff]
    %v77 = vld [vmem:[#allocation2 + $0x20] sm:$0xff]
    %v78 = vld [vmem:[#allocation2 + $0x28] sm:$0xff]
    %v79 = vld [vmem:[#allocation2 + $0x30] sm:$0xff]
    %v80 = vld [vmem:[#allocation2 + $0x38] sm:$0xff]
    %v81 = vld [vmem:[#allocation2 + $0x40] sm:$0xff]
    %v82 = vld [vmem:[#allocation2 + $0x48] sm:$0xff]
    %v83 = vld [vmem:[#allocation2 + $0x50] sm:$0xff]
    %v84 = vld [vmem:[#allocation2 + $0x58] sm:$0xff]
    %v85 = vld [vmem:[#allocation2 + $0x60] sm:$0xff]
    %v86 = vld [vmem:[#allocation2 + $0x68] sm:$0xff]
    %v87 = vld [vmem:[#allocation2 + $0x70] sm:$0xff]
    %v88 = vld [vmem:[#allocation2 + $0x78] sm:$0xff]
    %v89 = vld [vmem:[#allocation2 + $0x80] sm:$0xff]
    %v90 = vld [vmem:[#allocation2 + $0x88] sm:$0xff]
    %v91 = vld [vmem:[#allocation2 + $0x90] sm:$0xff]
    %v92 = vld [vmem:[#allocation2 + $0x98] sm:$0xff]
    %v93 = vld [vmem:[#allocation2 + $0xa0] sm:$0xff]
    %v94 = vld [vmem:[#allocation2 + $0xa8] sm:$0xff]
    %v95 = vld [vmem:[#allocation2 + $0xb0] sm:$0xff]
    %v96 = vld [vmem:[#allocation2 + $0xb8] sm:$0xff]
    %v97 = vld [vmem:[#allocation2 + $0xc0] sm:$0xff]
    %v98 = vld [vmem:[#allocation2 + $0xc8] sm:$0xff]
    %v99 = vld [vmem:[#allocation2 + $0xd0] sm:$0xff]
    %v100 = vld [vmem:[#allocation2 + $0xd8] sm:$0xff]
    %v101 = vld [vmem:[#allocation2 + $0xe0] sm:$0xff]
    %v102 = vld [vmem:[#allocation2 + $0xe8] sm:$0xff]
    %v103 = vld [vmem:[#allocation2 + $0xf0] sm:$0xff]
    %v104 = vld [vmem:[#allocation2 + $0xf8] sm:$0xff]
    %105 = vmatprep.subr.mxu0 0.0
    %106 = vmatpush1.msra.mxu0 %v73
    %107 = vmatprep.subr.mxu0 0.0
    %108 = vmatpush1.msra.mxu0 %v74
    %109 = vmatprep.subr.mxu0 0.0
    %110 = vmatpush1.msra.mxu0 %v75
    %111 = vmatprep.subr.mxu0 0.0
    %112 = vmatpush1.msra.mxu0 %v76
    %113 = vmatprep.subr.mxu0 0.0
    %114 = vmatpush1.msra.mxu0 %v77
    %115 = vmatprep.subr.mxu0 0.0
    %116 = vmatpush1.msra.mxu0 %v78
    %117 = vmatprep.subr.mxu0 0.0
    %118 = vmatpush1.msra.mxu0 %v79
    %119 = vmatprep.subr.mxu0 0.0
    %120 = vmatpush1.msra.mxu0 %v80
    %121 = vmatprep.subr.mxu0 0.0
    %122 = vmatpush1.msra.mxu0 %v81
    %123 = vmatprep.subr.mxu0 0.0
    %124 = vmatpush1.msra.mxu0 %v82
    %125 = vmatprep.subr.mxu0 0.0
    %126 = vmatpush1.msra.mxu0 %v83
    %127 = vmatprep.subr.mxu0 0.0
    %128 = vmatpush1.msra.mxu0 %v84
    %129 = vmatprep.subr.mxu0 0.0
    %130 = vmatpush1.msra.mxu0 %v85
    %131 = vmatprep.subr.mxu0 0.0
    %132 = vmatpush1.msra.mxu0 %v86
    %133 = vmatprep.subr.mxu0 0.0
    %134 = vmatpush1.msra.mxu0 %v87
    %135 = vmatprep.subr.mxu0 0.0
    %136 = vmatpush1.msra.mxu0 %v88
    %137 = vmatprep.subr.mxu0 0.0
    %138 = vmatpush1.msra.mxu0 %v89
    %139 = vmatprep.subr.mxu0 0.0
    %140 = vmatpush1.msra.mxu0 %v90
    %141 = vmatprep.subr.mxu0 0.0
    %142 = vmatpush1.msra.mxu0 %v91
    %143 = vmatprep.subr.mxu0 0.0
    %144 = vmatpush1.msra.mxu0 %v92
    %145 = vmatprep.subr.mxu0 0.0
    %146 = vmatpush1.msra.mxu0 %v93
    %147 = vmatprep.subr.mxu0 0.0
    %148 = vmatpush1.msra.mxu0 %v94
    %149 = vmatprep.subr.mxu0 0.0
    %150 = vmatpush1.msra.mxu0 %v95
    %151 = vmatprep.subr.mxu0 0.0
    %152 = vmatpush1.msra.mxu0 %v96
    %153 = vmatprep.subr.mxu0 0.0
    %154 = vmatpush1.msra.mxu0 %v97
    %155 = vmatprep.subr.mxu0 0.0
    %156 = vmatpush1.msra.mxu0 %v98
    %157 = vmatprep.subr.mxu0 0.0
    %158 = vmatpush1.msra.mxu0 %v99
    %159 = vmatprep.subr.mxu0 0.0
    %160 = vmatpush1.msra.mxu0 %v100
    %161 = vmatprep.subr.mxu0 0.0
    %162 = vmatpush1.msra.mxu0 %v101
    %163 = vmatprep.subr.mxu0 0.0
    %164 = vmatpush1.msra.mxu0 %v102
    %165 = vmatprep.subr.mxu0 0.0
    %166 = vmatpush1.msra.mxu0 %v103
    %167 = vmatprep.subr.mxu0 0.0
    %168 = vmatpush1.msra.mxu0 %v104
    %169 = vmatprep.mubr.f32.mxu0 %v72
    %170 = vmatmul.mubr.f32.gmra.mrb[0].mxu0 %v71
    %v171 = vpop.f32.mrb[0].mxu0
    %v172 = vadd.f32 0.0, %v171
    %v173 = vpop.f32.mrb[0].mxu0
    %174 = vdwg.mxu0
    %175 = vst [vmem:[%s2] sm:$0xff] %v172
    // Predicated region
    $region14: #{_dense_expander_forward.1} parent=1 // pred_check
      _
    $region15: #{_dense_expander_forward.1} parent=1 // pred_check_branch
      %177 = sbr.rel (0) target = $region17
    $region16: #{_dense_expander_forward.1} parent=1 // pred_region
      _
    $region17: #{_dense_expander_forward.1} parent=1 // pred_fallthru
      _
    // Predicated region
    $region18: #{_dense_expander_forward.1} parent=1 // pred_check
      _
    $region19: #{_dense_expander_forward.1} parent=1 // pred_check_branch
      %179 = sbr.rel (0) target = $region21
    $region20: #{_dense_expander_forward.1} parent=1 // pred_region
      _
    $region21: #{_dense_expander_forward.1} parent=1 // pred_fallthru
      _
    %180 = vsyncpa [#allocation3], 1

</llo_original>
